<compile_context>
chip_gen: v7x
topology: tpu7x:2x2x1
jax: 0.10.0
libtpu: 0.0.40
codegen_flags: <defaults>
</compile_context>

<pallas_src>
import functools

import jax
import jax.numpy as jnp
from jax.experimental import pallas as pl
from jax.experimental.pallas import tpu as pltpu


ALPHA = 0.2  # torch default distillation mixing coefficient


def _pick_tiles(batch, seq, hidden, itemsize, tile_budget_bytes=8 << 20):
    """Choose (TB, TS) so one (TB, TS, H) block fits the VMEM budget (with
    double-buffering headroom) and the 2-D operands' (TB, L)/(TB, 1) blocks
    respect the TPU (8, 128) block rules (TB == B or TB % 8 == 0)."""
    if batch <= 8:
        tb = batch
    elif batch % 8 == 0:
        tb = 8
    else:
        tb = batch  # whole batch as one tile keeps the (8,128) rule trivially
    max_ts = max(8, tile_budget_bytes // max(1, tb * hidden * itemsize))
    if seq <= max_ts:
        return tb, seq
    ts = None
    for cand in range(8, int(min(seq, max_ts)) + 1, 8):
        if seq % cand == 0:
            ts = cand
    if ts is None:
        ts = seq  # no clean multiple-of-8 divisor; stream the whole sequence
    return tb, ts


def _toxcl_head_kernel(scalars_ref, h_ref, w_ref, b_ref, teacher_ref,
                       labels_ref, probs_ref, bce_rows_ref, kl_rows_ref,
                       acc_ref, *, inv_seq_len):
    """Streamed mean-pool + classifier + softmax + BCE/KL partial sums.

    Grid: (B tiles ["parallel"], S tiles ["arbitrary", reduction last]).
      scalars_ref: SMEM (2,)        [alpha, has_teacher]
      h_ref:       VMEM (TB, TS, H) hidden-state tile (input dtype, streamed)
      w_ref:       VMEM (H, L)      classifier weight (resident)
      b_ref:       VMEM (1, L)      classifier bias (resident)
      teacher_ref: VMEM (TB, L)     teacher logits for this B tile
      labels_ref:  VMEM (TB, L)     float labels for this B tile
      probs_ref:   VMEM (TB, L)     softmax(classifier(mean_pool(h)))
      bce_rows_ref:VMEM (TB, 1)     per-row BCE sums (wrapper divides by B*L)
      kl_rows_ref: VMEM (TB, 1)     per-row "KL" sums (wrapper divides by B)
      acc_ref:     VMEM (TB, H) f32 sequence-sum accumulator (scratch)
    """
    k = pl.program_id(1)

    @pl.when(k == 0)
    def _init():
        acc_ref[...] = jnp.zeros_like(acc_ref)

    # Streamed sequence sum; upcast only the live tile to f32.
    acc_ref[...] += jnp.sum(h_ref[...].astype(jnp.float32), axis=1)

    @pl.when(k == pl.num_programs(1) - 1)
    def _epilogue():
        cls_emb = acc_ref[...] * inv_seq_len                      # (TB, H)
        logits = jnp.dot(cls_emb, w_ref[...].astype(jnp.float32),
                         preferred_element_type=jnp.float32)
        logits = logits + b_ref[...].astype(jnp.float32)          # (TB, L)

        # Student softmax.  Exact division: the (TB, L) epilogue is tiny and
        # approx reciprocal (bf16-grade) is not accurate enough for the
        # distillation term downstream.
        m = jnp.max(logits, axis=-1, keepdims=True)
        e = jnp.exp(logits - m)
        probs = e / jnp.sum(e, axis=-1, keepdims=True)
        probs_ref[...] = probs.astype(probs_ref.dtype)

        # Teacher softmax (exact, same reasoning).
        t = teacher_ref[...].astype(jnp.float32)
        tm = jnp.max(t, axis=-1, keepdims=True)
        te = jnp.exp(t - tm)
        teacher = te / jnp.sum(te, axis=-1, keepdims=True)

        alpha = scalars_ref[0]
        has_teacher = scalars_ref[1]
        eff_alpha = alpha * has_teacher        # 0 when no teacher => labels
        labels = labels_ref[...].astype(jnp.float32)
        target = eff_alpha * teacher + (1.0 - eff_alpha) * labels

        # nn.BCELoss(): mean over all elements; torch clamps log terms at -100.
        log_p = jnp.maximum(jnp.log(probs), -100.0)
        log_1mp = jnp.maximum(jnp.log(1.0 - probs), -100.0)
        bce = -(target * log_p + (1.0 - target) * log_1mp)        # (TB, L)
        bce_rows_ref[...] = jnp.sum(bce, axis=-1, keepdims=True)

        # Mirrors the torch code's KLDivLoss(log_target=True) applied to
        # probabilities (reproduces the source behaviour; not a true KL).
        kl = jnp.exp(teacher) * (teacher - probs)                 # (TB, L)
        kl_rows_ref[...] = jnp.sum(kl, axis=-1, keepdims=True)


@functools.partial(jax.jit, static_argnames=("has_teacher",))
def toxcl_head(last_hidden_state, w, b, teacher_logits, cls_labels,
               alpha=ALPHA, has_teacher=True):
    """Fused ToXCL classification head on TPU via Pallas.

    Returns (probs (B, L) f32, cls_loss scalar, kl_loss scalar).
    """
    B, S, H = last_hidden_state.shape
    L = w.shape[1]
    itemsize = jnp.dtype(last_hidden_state.dtype).itemsize
    tb, ts = _pick_tiles(B, S, H, itemsize)
    nb, ns = B // tb, S // ts

    scalars = jnp.stack([
        jnp.asarray(alpha, jnp.float32),
        jnp.asarray(1.0 if has_teacher else 0.0, jnp.float32),
    ])

    kernel = functools.partial(_toxcl_head_kernel, inv_seq_len=1.0 / S)

    h_tile_bytes = tb * ts * H * itemsize
    resident_bytes = (H * L + L + 4 * tb * L + 2 * tb + tb * H) * 4
    vmem_limit = int(min(40 << 20,
                         max(16 << 20,
                             4 * h_tile_bytes + 2 * resident_bytes + (2 << 20))))

    cost = pl.CostEstimate(
        flops=int(2 * B * S * H + 2 * B * H * L + 16 * B * L),
        transcendentals=int(6 * B * L),
        bytes_accessed=int(B * S * H * itemsize
                           + (H * L + L) * jnp.dtype(w.dtype).itemsize
                           + 6 * B * L * 4),
    )

    probs, bce_rows, kl_rows = pl.pallas_call(
        kernel,
        out_shape=(
            jax.ShapeDtypeStruct((B, L), jnp.float32),
            jax.ShapeDtypeStruct((B, 1), jnp.float32),
            jax.ShapeDtypeStruct((B, 1), jnp.float32),
        ),
        grid_spec=pltpu.PrefetchScalarGridSpec(
            num_scalar_prefetch=0,
            grid=(nb, ns),
            in_specs=[
                pl.BlockSpec(memory_space=pltpu.MemorySpace.SMEM),  # scalars
                pl.BlockSpec((tb, ts, H), lambda i, k: (i, k, 0)),  # h stream
                pl.BlockSpec((H, L), lambda i, k: (0, 0)),          # weight
                pl.BlockSpec((1, L), lambda i, k: (0, 0)),          # bias
                pl.BlockSpec((tb, L), lambda i, k: (i, 0)),         # teacher
                pl.BlockSpec((tb, L), lambda i, k: (i, 0)),         # labels
            ],
            out_specs=(
                pl.BlockSpec((tb, L), lambda i, k: (i, 0)),
                pl.BlockSpec((tb, 1), lambda i, k: (i, 0)),
                pl.BlockSpec((tb, 1), lambda i, k: (i, 0)),
            ),
            scratch_shapes=[pltpu.VMEM((tb, H), jnp.float32)],
        ),
        compiler_params=pltpu.CompilerParams(
            dimension_semantics=("parallel", "arbitrary"),
            vmem_limit_bytes=vmem_limit,
        ),
        cost_estimate=cost,
    )(scalars, last_hidden_state, w, b.reshape(1, L), teacher_logits,
      cls_labels)

    # Tiny cross-B-tile finalization (kept out of the streamed kernel so the
    # B axis can be tiled / sharded across TensorCores safely).
    cls_loss = jnp.sum(bce_rows) / jnp.float32(B * L)   # torch BCELoss mean
    kl_loss = jnp.sum(kl_rows) / jnp.float32(B)         # batchmean
    return probs, cls_loss, kl_loss


def toxcl_forward(last_hidden_state, lm_loss, w, b, cls_labels,
                  teacher_logits=None, alpha=ALPHA):
    """Mirrors ToXCL.forward: returns (cls_outputs, lm_loss, cls_loss, kl_loss).

    `last_hidden_state` / `lm_loss` stand in for the external decoder_model
    outputs (not reproducible here).
    """
    B = last_hidden_state.shape[0]
    L = w.shape[1]
    if teacher_logits is None:
        probs, cls_loss, _ = toxcl_head(
            last_hidden_state, w, b, jnp.zeros((B, L), jnp.float32),
            cls_labels, alpha=alpha, has_teacher=False)
        kl_loss = jnp.float32(0.0)
    else:
        probs, cls_loss, kl_loss = toxcl_head(
            last_hidden_state, w, b, teacher_logits, cls_labels,
            alpha=alpha, has_teacher=True)
    return probs, lm_loss, cls_loss, kl_loss


if __name__ == "__main__":
    # Small synthetic shapes consistent with the module's forward.
    B, S, H, L = 2, 8, 32, 2   # batch, seq, hidden_size, num_labels

    key = jax.random.PRNGKey(0)
    k_h, k_w, k_b, k_t, k_lbl, k_lm = jax.random.split(key, 6)

    last_hidden_state = jax.random.normal(k_h, (B, S, H), dtype=jnp.float32)
    w = jax.random.normal(k_w, (H, L), dtype=jnp.float32) * 0.02
    b = jax.random.normal(k_b, (L,), dtype=jnp.float32) * 0.02
    teacher_logits = jax.random.normal(k_t, (B, L), dtype=jnp.float32)
    lbl_idx = jax.random.randint(k_lbl, (B,), 0, L)
    cls_labels = jax.nn.one_hot(lbl_idx, L, dtype=jnp.float32)
    lm_loss = jnp.abs(jax.random.normal(k_lm, (), dtype=jnp.float32))

    # Teacher branch.
    cls_outputs, lm_out, cls_loss, kl_loss = toxcl_forward(
        last_hidden_state, lm_loss, w, b, cls_labels, teacher_logits)
    # No-teacher branch (target == labels, kl == 0).
    cls_outputs_nt, _, cls_loss_nt, kl_loss_nt = toxcl_forward(
        last_hidden_state, lm_loss, w, b, cls_labels, None)

    jax.block_until_ready((cls_outputs, lm_out, cls_loss, kl_loss,
                           cls_outputs_nt, cls_loss_nt, kl_loss_nt))

    # Pure-JAX reference of the kernel math.
    emb = jnp.mean(last_hidden_state, axis=1)
    logits = emb @ w + b
    probs_ref = jax.nn.softmax(logits, axis=-1)
    teacher_ref = jax.nn.softmax(teacher_logits, axis=-1)
    target_ref = ALPHA * teacher_ref + (1 - ALPHA) * cls_labels

    def bce_mean(p, t):
        return jnp.mean(-(t * jnp.maximum(jnp.log(p), -100.0)
                          + (1 - t) * jnp.maximum(jnp.log(1 - p), -100.0)))

    bce_ref = bce_mean(probs_ref, target_ref)
    kl_ref = jnp.sum(jnp.exp(teacher_ref) * (teacher_ref - probs_ref)) / B
    bce_nt_ref = bce_mean(probs_ref, cls_labels)

    tol = dict(atol=2e-3, rtol=2e-3)
    assert jnp.allclose(cls_outputs, probs_ref, **tol), "probs mismatch"
    assert jnp.allclose(cls_loss, bce_ref, **tol), "bce mismatch"
    assert jnp.allclose(kl_loss, kl_ref, **tol), "kl mismatch"
    assert jnp.allclose(cls_outputs_nt, probs_ref, **tol), "probs (no-teacher)"
    assert jnp.allclose(cls_loss_nt, bce_nt_ref, **tol), "bce (no-teacher)"
    assert float(kl_loss_nt) == 0.0, "kl (no-teacher) must be exactly 0"

    print("KERNEL_OK")
</pallas_src>

<mosaic_0001>
module attributes {stable_mosaic.version = 11 : i64} {
  func.func @_toxcl_head_kernel(%arg0: i32, %arg1: i32, %arg2: memref<2xf32, #tpu.memory_space<smem>>, %arg3: memref<2x8x32xf32, #tpu.memory_space<vmem>>, %arg4: memref<32x2xf32, #tpu.memory_space<vmem>>, %arg5: memref<1x2xf32, #tpu.memory_space<vmem>>, %arg6: memref<2x2xf32, #tpu.memory_space<vmem>>, %arg7: memref<2x2xf32, #tpu.memory_space<vmem>>, %arg8: memref<2x2xf32, #tpu.memory_space<vmem>>, %arg9: memref<2x1xf32, #tpu.memory_space<vmem>>, %arg10: memref<2x1xf32, #tpu.memory_space<vmem>>, %arg11: memref<2x32xf32, #tpu.memory_space<vmem>>) attributes {dimension_semantics = [#tpu.dimension_semantics<parallel>, #tpu.dimension_semantics<arbitrary>], iteration_bounds = array<i64: 1, 1>, scalar_prefetch = 0 : i64, scratch_operands = 1 : i64, tpu.core_type = #tpu.core_type<tc>, window_params = [{transform_indices = @transform_0, window_bounds = array<i64: 2>}, {transform_indices = @transform_1, window_bounds = array<i64: 2, 8, 32>}, {pipeline_mode = #tpu.pipeline_mode<synchronous>, transform_indices = @transform_2, window_bounds = array<i64: 32, 2>}, {pipeline_mode = #tpu.pipeline_mode<synchronous>, transform_indices = @transform_3, window_bounds = array<i64: 1, 2>}, {transform_indices = @transform_4, window_bounds = array<i64: 2, 2>}, {transform_indices = @transform_5, window_bounds = array<i64: 2, 2>}, {transform_indices = @transform_6, window_bounds = array<i64: 2, 2>}, {transform_indices = @transform_7, window_bounds = array<i64: 2, 1>}, {transform_indices = @transform_8, window_bounds = array<i64: 2, 1>}]} {
    %c0_i32 = arith.constant 0 : i32
    %0 = arith.cmpi eq, %arg1, %c0_i32 : i32
    %1 = arith.extui %0 : i1 to i32
    %c0_i32_0 = arith.constant 0 : i32
    %2 = arith.cmpi ne, %1, %c0_i32_0 : i32
    scf.if %2 {
      %cst_9 = arith.constant 0.000000e+00 : f32
      %11 = vector.broadcast %cst_9 : f32 to vector<2x32xf32>
      %c0_10 = arith.constant 0 : index
      %c0_11 = arith.constant 0 : index
      %12 = vector.load %arg11[%c0_10, %c0_11] : memref<2x32xf32, #tpu.memory_space<vmem>>, vector<2x32xf32>
      tpu.vector_store %arg11[%c0_10, %c0_11], %11 {strides = array<i32>} : memref<2x32xf32, #tpu.memory_space<vmem>>, vector<2x32xf32>,
    } else {
    }
    %c0 = arith.constant 0 : index
    %c0_1 = arith.constant 0 : index
    %3 = vector.load %arg11[%c0, %c0_1] : memref<2x32xf32, #tpu.memory_space<vmem>>, vector<2x32xf32>
    %c0_2 = arith.constant 0 : index
    %c0_3 = arith.constant 0 : index
    %c0_4 = arith.constant 0 : index
    %4 = vector.load %arg3[%c0_2, %c0_3, %c0_4] : memref<2x8x32xf32, #tpu.memory_space<vmem>>, vector<2x8x32xf32>
    %cst = arith.constant dense<0.000000e+00> : vector<2x32xf32>
    %5 = vector.multi_reduction <add>, %4, %cst [1] : vector<2x8x32xf32> to vector<2x32xf32>
    %6 = arith.addf %3, %5 : vector<2x32xf32>
    %c0_5 = arith.constant 0 : index
    %c0_6 = arith.constant 0 : index
    %7 = vector.load %arg11[%c0_5, %c0_6] : memref<2x32xf32, #tpu.memory_space<vmem>>, vector<2x32xf32>
    tpu.vector_store %arg11[%c0_5, %c0_6], %6 {strides = array<i32>} : memref<2x32xf32, #tpu.memory_space<vmem>>, vector<2x32xf32>,
    %c0_i32_7 = arith.constant 0 : i32
    %8 = arith.cmpi eq, %arg1, %c0_i32_7 : i32
    %9 = arith.extui %8 : i1 to i32
    %c0_i32_8 = arith.constant 0 : i32
    %10 = arith.cmpi ne, %9, %c0_i32_8 : i32
    scf.if %10 {
      %c0_9 = arith.constant 0 : index
      %c0_10 = arith.constant 0 : index
      %11 = vector.load %arg11[%c0_9, %c0_10] : memref<2x32xf32, #tpu.memory_space<vmem>>, vector<2x32xf32>
      %cst_11 = arith.constant 1.250000e-01 : f32
      %12 = vector.broadcast %cst_11 : f32 to vector<2x32xf32>
      %13 = arith.mulf %11, %12 : vector<2x32xf32>
      %c0_12 = arith.constant 0 : index
      %c0_13 = arith.constant 0 : index
      %14 = vector.load %arg4[%c0_12, %c0_13] : memref<32x2xf32, #tpu.memory_space<vmem>>, vector<32x2xf32>
      %cst_14 = arith.constant dense<0.000000e+00> : vector<2x2xf32>
      %15 = tpu.matmul %13, %14, %cst_14 {dimension_numbers = #tpu.dot_dimension_numbers<[1], [0], [0], [1], [0, 0, 1, 1], [], []>} : vector<2x32xf32>, vector<32x2xf32>, vector<2x2xf32> -> vector<2x2xf32>
      %c0_15 = arith.constant 0 : index
      %c0_16 = arith.constant 0 : index
      %16 = vector.load %arg5[%c0_15, %c0_16] : memref<1x2xf32, #tpu.memory_space<vmem>>, vector<1x2xf32>
      %17 = vector.broadcast %16 : vector<1x2xf32> to vector<2x2xf32>
      %18 = arith.addf %15, %17 : vector<2x2xf32>
      %cst_17 = arith.constant dense<0xFF800000> : vector<2xf32>
      %19 = vector.multi_reduction <maximumf>, %18, %cst_17 [1] : vector<2x2xf32> to vector<2xf32>
      %20 = vector.shape_cast %19 : vector<2xf32> to vector<2x1xf32>
      %21 = vector.broadcast %20 : vector<2x1xf32> to vector<2x2xf32>
      %22 = arith.subf %18, %21 : vector<2x2xf32>
      %23 = math.exp %22 : vector<2x2xf32>
      %cst_18 = arith.constant dense<0.000000e+00> : vector<2xf32>
      %24 = vector.multi_reduction <add>, %23, %cst_18 [1] : vector<2x2xf32> to vector<2xf32>
      %25 = vector.shape_cast %24 : vector<2xf32> to vector<2x1xf32>
      %26 = vector.broadcast %25 : vector<2x1xf32> to vector<2x2xf32>
      %27 = arith.divf %23, %26 : vector<2x2xf32>
      %c0_19 = arith.constant 0 : index
      %c0_20 = arith.constant 0 : index
      %28 = vector.load %arg8[%c0_19, %c0_20] : memref<2x2xf32, #tpu.memory_space<vmem>>, vector<2x2xf32>
      tpu.vector_store %arg8[%c0_19, %c0_20], %27 {strides = array<i32>} : memref<2x2xf32, #tpu.memory_space<vmem>>, vector<2x2xf32>,
      %c0_21 = arith.constant 0 : index
      %c0_22 = arith.constant 0 : index
      %29 = vector.load %arg6[%c0_21, %c0_22] : memref<2x2xf32, #tpu.memory_space<vmem>>, vector<2x2xf32>
      %cst_23 = arith.constant dense<0xFF800000> : vector<2xf32>
      %30 = vector.multi_reduction <maximumf>, %29, %cst_23 [1] : vector<2x2xf32> to vector<2xf32>
      %31 = vector.shape_cast %30 : vector<2xf32> to vector<2x1xf32>
      %32 = vector.broadcast %31 : vector<2x1xf32> to vector<2x2xf32>
      %33 = arith.subf %29, %32 : vector<2x2xf32>
      %34 = math.exp %33 : vector<2x2xf32>
      %cst_24 = arith.constant dense<0.000000e+00> : vector<2xf32>
      %35 = vector.multi_reduction <add>, %34, %cst_24 [1] : vector<2x2xf32> to vector<2xf32>
      %36 = vector.shape_cast %35 : vector<2xf32> to vector<2x1xf32>
      %37 = vector.broadcast %36 : vector<2x1xf32> to vector<2x2xf32>
      %38 = arith.divf %34, %37 : vector<2x2xf32>
      %c0_25 = arith.constant 0 : index
      %39 = memref.load %arg2[%c0_25] : memref<2xf32, #tpu.memory_space<smem>>
      %c1 = arith.constant 1 : index
      %40 = memref.load %arg2[%c1] : memref<2xf32, #tpu.memory_space<smem>>
      %41 = arith.mulf %39, %40 : f32
      %c0_26 = arith.constant 0 : index
      %c0_27 = arith.constant 0 : index
      %42 = vector.load %arg7[%c0_26, %c0_27] : memref<2x2xf32, #tpu.memory_space<vmem>>, vector<2x2xf32>
      %43 = vector.broadcast %41 : f32 to vector<2x2xf32>
      %44 = arith.mulf %43, %38 : vector<2x2xf32>
      %cst_28 = arith.constant 1.000000e+00 : f32
      %45 = arith.subf %cst_28, %41 : f32
      %46 = vector.broadcast %45 : f32 to vector<2x2xf32>
      %47 = arith.mulf %46, %42 : vector<2x2xf32>
      %48 = arith.addf %44, %47 : vector<2x2xf32>
      %49 = math.log %27 : vector<2x2xf32>
      %cst_29 = arith.constant -1.000000e+02 : f32
      %50 = vector.broadcast %cst_29 : f32 to vector<2x2xf32>
      %51 = arith.maximumf %49, %50 : vector<2x2xf32>
      %cst_30 = arith.constant 1.000000e+00 : f32
      %52 = vector.broadcast %cst_30 : f32 to vector<2x2xf32>
      %53 = arith.subf %52, %27 : vector<2x2xf32>
      %54 = math.log %53 : vector<2x2xf32>
      %cst_31 = arith.constant -1.000000e+02 : f32
      %55 = vector.broadcast %cst_31 : f32 to vector<2x2xf32>
      %56 = arith.maximumf %54, %55 : vector<2x2xf32>
      %57 = arith.mulf %48, %51 : vector<2x2xf32>
      %cst_32 = arith.constant 1.000000e+00 : f32
      %58 = vector.broadcast %cst_32 : f32 to vector<2x2xf32>
      %59 = arith.subf %58, %48 : vector<2x2xf32>
      %60 = arith.mulf %59, %56 : vector<2x2xf32>
      %61 = arith.addf %57, %60 : vector<2x2xf32>
      %cst_33 = arith.constant 0.000000e+00 : f32
      %62 = vector.broadcast %cst_33 : f32 to vector<2x2xf32>
      %63 = arith.subf %62, %61 : vector<2x2xf32>
      %cst_34 = arith.constant dense<0.000000e+00> : vector<2xf32>
      %64 = vector.multi_reduction <add>, %63, %cst_34 [1] : vector<2x2xf32> to vector<2xf32>
      %65 = vector.shape_cast %64 : vector<2xf32> to vector<2x1xf32>
      %c0_35 = arith.constant 0 : index
      %c0_36 = arith.constant 0 : index
      %66 = vector.load %arg9[%c0_35, %c0_36] : memref<2x1xf32, #tpu.memory_space<vmem>>, vector<2x1xf32>
      tpu.vector_store %arg9[%c0_35, %c0_36], %65 {strides = array<i32>} : memref<2x1xf32, #tpu.memory_space<vmem>>, vector<2x1xf32>,
      %67 = math.exp %38 : vector<2x2xf32>
      %68 = arith.subf %38, %27 : vector<2x2xf32>
      %69 = arith.mulf %67, %68 : vector<2x2xf32>
      %cst_37 = arith.constant dense<0.000000e+00> : vector<2xf32>
      %70 = vector.multi_reduction <add>, %69, %cst_37 [1] : vector<2x2xf32> to vector<2xf32>
      %71 = vector.shape_cast %70 : vector<2xf32> to vector<2x1xf32>
      %c0_38 = arith.constant 0 : index
      %c0_39 = arith.constant 0 : index
      %72 = vector.load %arg10[%c0_38, %c0_39] : memref<2x1xf32, #tpu.memory_space<vmem>>, vector<2x1xf32>
      tpu.vector_store %arg10[%c0_38, %c0_39], %71 {strides = array<i32>} : memref<2x1xf32, #tpu.memory_space<vmem>>, vector<2x1xf32>,
    } else {
    }
    return
  }
  func.func @transform_0(%arg0: i32, %arg1: i32) -> i32 {
    %c0_i32 = arith.constant 0 : i32
    %c0_i32_0 = arith.constant 0 : i32
    return %c0_i32 : i32
  }
  func.func @transform_1(%arg0: i32, %arg1: i32) -> (i32, i32, i32) {
    %c0_i32 = arith.constant 0 : i32
    %c0_i32_0 = arith.constant 0 : i32
    return %arg0, %arg1, %c0_i32 : i32, i32, i32
  }
  func.func @transform_2(%arg0: i32, %arg1: i32) -> (i32, i32) {
    %c0_i32 = arith.constant 0 : i32
    %c0_i32_0 = arith.constant 0 : i32
    %c0_i32_1 = arith.constant 0 : i32
    return %c0_i32, %c0_i32_0 : i32, i32
  }
  func.func @transform_3(%arg0: i32, %arg1: i32) -> (i32, i32) {
    %c0_i32 = arith.constant 0 : i32
    %c0_i32_0 = arith.constant 0 : i32
    %c0_i32_1 = arith.constant 0 : i32
    return %c0_i32, %c0_i32_0 : i32, i32
  }
  func.func @transform_4(%arg0: i32, %arg1: i32) -> (i32, i32) {
    %c0_i32 = arith.constant 0 : i32
    %c0_i32_0 = arith.constant 0 : i32
    return %arg0, %c0_i32 : i32, i32
  }
  func.func @transform_5(%arg0: i32, %arg1: i32) -> (i32, i32) {
    %c0_i32 = arith.constant 0 : i32
    %c0_i32_0 = arith.constant 0 : i32
    return %arg0, %c0_i32 : i32, i32
  }
  func.func @transform_6(%arg0: i32, %arg1: i32) -> (i32, i32) {
    %c0_i32 = arith.constant 0 : i32
    %c0_i32_0 = arith.constant 0 : i32
    return %arg0, %c0_i32 : i32, i32
  }
  func.func @transform_7(%arg0: i32, %arg1: i32) -> (i32, i32) {
    %c0_i32 = arith.constant 0 : i32
    %c0_i32_0 = arith.constant 0 : i32
    return %arg0, %c0_i32 : i32, i32
  }
  func.func @transform_8(%arg0: i32, %arg1: i32) -> (i32, i32) {
    %c0_i32 = arith.constant 0 : i32
    %c0_i32_0 = arith.constant 0 : i32
    return %arg0, %c0_i32 : i32, i32
  }
}

</mosaic_0001>

<llo_original>
// kernel: toxcl_head.1
$region0: #{toxcl_head.1}
  #allocation0 [shape = 'u32[]', space=smem, size = 0x4, offset = 0x4, fixed_abs, tag = 'smem constant byte address 0x4 - core index']
  #allocation1 [shape = 'u32[144,128]{1,0:T(1,128)}', space=vmem, size = 0x12000, scoped, tag = 'internal scratch']
  #allocation2 [shape = 'f32[2,32]{1,0:T(2,128)}', space=vmem, size = 0x400, scoped, tag = 'scratch operand']
  %s0 = inlined_call_operand.vmem [shape: f32[2], index: 0, kind: input, shape index: {}]
  %s1 = inlined_call_operand.vmem [shape: f32[2,8,32], index: 1, kind: input, shape index: {}]
  %s2 = inlined_call_operand.vmem [shape: f32[32,2], index: 2, kind: input, shape index: {}]
  %s3 = inlined_call_operand.vmem [shape: f32[1,2], index: 3, kind: input, shape index: {}]
  %s4 = inlined_call_operand.vmem [shape: f32[2,2], index: 4, kind: input, shape index: {}]
  %s5 = inlined_call_operand.vmem [shape: f32[2,2], index: 5, kind: input, shape index: {}]
  %s6 = inlined_call_operand.hbm [shape: f32[2,2], index: 6, kind: output, shape index: {0}]
  %s7 = inlined_call_operand.vmem [shape: f32[2,1], index: 7, kind: output, shape index: {1}]
  %s8 = inlined_call_operand.vmem [shape: f32[2,1], index: 8, kind: output, shape index: {2}]
  %9 = xla_tuple %s6, %s7, %s8
  %s10 = sld [smem:[#allocation0]]
  $region62: #{toxcl_head.1} parent=0
    _
  %s12 = ssub.s32 1, %s10
  %s13 = scalar_select 0, %s12, %s10
  $region1: #{toxcl_head.1} parent=0
    #allocation3 [shape = 'u8[512]{0}', space=smem, size = 0x200, scoped, tag = 'input window, operand 0, single buffered']
    #allocation4 [shape = 's32[1]{0}', space=sflag, size = 0x4, scoped, tag = 'scoped memory for toxcl_head.1']
    #allocation5 [shape = 's32[1]{0}', space=sflag, size = 0x4, scoped, tag = 'scoped memory for toxcl_head.1']
    #allocation6 [shape = 'u8[1024]{0}', space=vmem, size = 0x400, scoped, tag = 'output window, operand 0, single buffered']
    %14 = vsyncpa [#allocation5], 0
    %15 = vsyncpa [#allocation4], 0
    // Predicated region
    $region2: #{toxcl_head.1} parent=1 // pred_check
      _
    $region3: #{toxcl_head.1} parent=1 // pred_check_branch
      %17 = sbr.rel (0) target = $region5
    $region4: #{toxcl_head.1} parent=1 // pred_region
      %s19 = ssub.s32 16, 16
      %20 = vsyncadd [#allocation5], %s19
      %s22 = sshll.u32 %s0, 4
      %s23 = int_to_ptr.vmem [resolvable:$true] %s22
      %25 = dma.vmem_to_smem %s23, 16, [#allocation3], [#allocation5]
    $region5: #{toxcl_head.1} parent=1 // pred_fallthru
      _
    // Predicated region
    $region6: #{toxcl_head.1} parent=1 // pred_check
      _
    $region7: #{toxcl_head.1} parent=1 // pred_check_branch
      %27 = sbr.rel (0) target = $region9
    $region8: #{toxcl_head.1} parent=1 // pred_region
      _
    $region9: #{toxcl_head.1} parent=1 // pred_fallthru
      _
    // Predicated region
    $region10: #{toxcl_head.1} parent=1 // pred_check
      _
    $region11: #{toxcl_head.1} parent=1 // pred_check_branch
      %29 = sbr.rel (0) target = $region13
    $region12: #{toxcl_head.1} parent=1 // pred_region
      _
    $region13: #{toxcl_head.1} parent=1 // pred_fallthru
      _
    // Predicated region
    $region14: #{toxcl_head.1} parent=1 // pred_check
      _
    $region15: #{toxcl_head.1} parent=1 // pred_check_branch
      %31 = sbr.rel (0) target = $region17
    $region16: #{toxcl_head.1} parent=1 // pred_region
      _
    $region17: #{toxcl_head.1} parent=1 // pred_fallthru
      _
    // Predicated region
    $region18: #{toxcl_head.1} parent=1 // pred_check
      _
    $region19: #{toxcl_head.1} parent=1 // pred_check_branch
      %33 = sbr.rel (0) target = $region21
    $region20: #{toxcl_head.1} parent=1 // pred_region
      _
    $region21: #{toxcl_head.1} parent=1 // pred_fallthru
      _
    // Predicated region
    $region22: #{toxcl_head.1} parent=1 // pred_check
      _
    $region23: #{toxcl_head.1} parent=1 // pred_check_branch
      %35 = sbr.rel (0) target = $region25
    $region24: #{toxcl_head.1} parent=1 // pred_region
      _
    $region25: #{toxcl_head.1} parent=1 // pred_fallthru
      _
    // Predicated region
    $region26: #{toxcl_head.1} parent=1 // pred_check
      _
    $region27: #{toxcl_head.1} parent=1 // pred_check_branch
      %37 = sbr.rel (0) target = $region29
    $region28: #{toxcl_head.1} parent=1 // pred_region
      %38 = dma.done [#allocation5], 16
    $region29: #{toxcl_head.1} parent=1 // pred_fallthru
      _
    %39 = sfence
    %p40 = scmp.eq.s32.totalorder 0, 0
    // Predicated region
    $region30: #{toxcl_head.1} parent=1 // pred_check
      %p41 = pneg %p40
    $region31: #{toxcl_head.1} parent=1 // pred_check_branch
      %43 = sbr.rel (%p41) target = $region33
    $region32: #{toxcl_head.1} parent=1 // pred_region
      %vm44 = vcmask 254976
      %45 = vst.msk [vmem:[#allocation2] sm:$0x3] %vm44, 0.0
    $region33: #{toxcl_head.1} parent=1 // pred_fallthru
      _
    %v46 = vld [vmem:[#allocation2] sm:$0x3]
    %v47 = vld [vmem:[%s1] sm:$0xff]
    %v48 = vld [vmem:[%s1 + $0x8] sm:$0xff]
    %vm49 = vcmask 261120
    %v50 = vsel %vm49, %v47, 0.0
    %v51 = vrot.slane %v50, 4
    %v52 = vadd.f32 %v50, %v51
    %v53 = vrot.slane %v52, 2
    %v54 = vadd.f32 %v52, %v53
    %v55 = vrot.slane %v54, 1
    %v56 = vadd.f32 %v54, %v55
    %v57 = vsel %vm49, %v48, 0.0
    %v58 = vrot.slane %v57, 4
    %v59 = vadd.f32 %v57, %v58
    %v60 = vrot.slane %v59, 2
    %v61 = vadd.f32 %v59, %v60
    %v62 = vrot.slane %v61, 1
    %v63 = vadd.f32 %v61, %v62
    %vm66 = vcmask 1041409
    %v67 = vsel %vm66, %v63, %v56
    %v69 = vadd.f32 %v46, %v67
    %vm70 = vcmask 254976
    %71 = vst.msk [vmem:[#allocation2] sm:$0x3] %vm70, %v69
    // Predicated region
    $region34: #{toxcl_head.1} parent=1 // pred_check
      %p72 = pneg %p40
    $region35: #{toxcl_head.1} parent=1 // pred_check_branch
      %74 = sbr.rel (%p72) target = $region37
    $region36: #{toxcl_head.1} parent=1 // pred_region
      %v75 = vld [vmem:[#allocation2] sm:$0x3]
      %v76 = vmul.f32 %v75, 0.125
      %v77 = vld [vmem:[%s2] sm:$0xff]
      %v78 = vld [vmem:[%s2 + $0x8] sm:$0xff]
      %v79 = vld [vmem:[%s2 + $0x10] sm:$0xff]
      %v80 = vld [vmem:[%s2 + $0x18] sm:$0xff]
      %v81 = vld [vmem:[%s3] sm:$0x1]
      %v83 = vlaneseq
      %v84 = vshrl.u32 %v83, 7
      %v85 = vsub.s32 0, %v84
      %v86 = vrot.slane %v81, %v85
      %v89 = vsel %vm49, %v76, 0
      %91 = vmatprep.subr.mxu0 0.0
      %92 = vmatpush1.msra.mxu0 %v77
      %93 = vmatprep.subr.mxu0 0.0
      %94 = vmatpush1.msra.mxu0 %v78
      %95 = vmatprep.subr.mxu0 0.0
      %96 = vmatpush1.msra.mxu0 %v79
      %97 = vmatprep.subr.mxu0 0.0
      %98 = vmatpush1.msra.mxu0 %v80
      %99 = vmatprep.subr.mxu0 0.0
      %100 = vmatpush1.msra.mxu0 0.0
      %101 = vmatprep.subr.mxu0 0.0
      %102 = vmatpush1.msra.mxu0 0.0
      %103 = vmatprep.subr.mxu0 0.0
      %104 = vmatpush1.msra.mxu0 0.0
      %105 = vmatprep.subr.mxu0 0.0
      %106 = vmatpush1.msra.mxu0 0.0
      %107 = vmatprep.subr.mxu0 0.0
      %108 = vmatpush1.msra.mxu0 0.0
      %109 = vmatprep.subr.mxu0 0.0
      %110 = vmatpush1.msra.mxu0 0.0
      %111 = vmatprep.subr.mxu0 0.0
      %112 = vmatpush1.msra.mxu0 0.0
      %113 = vmatprep.subr.mxu0 0.0
      %114 = vmatpush1.msra.mxu0 0.0
      %115 = vmatprep.subr.mxu0 0.0
      %116 = vmatpush1.msra.mxu0 0.0
      %117 = vmatprep.subr.mxu0 0.0
      %118 = vmatpush1.msra.mxu0 0.0
      %119 = vmatprep.subr.mxu0 0.0
      %120 = vmatpush1.msra.mxu0 0.0
      %121 = vmatprep.subr.mxu0 0.0
      %122 = vmatpush1.msra.mxu0 0.0
      %123 = vmatprep.subr.mxu0 0.0
      %124 = vmatpush1.msra.mxu0 0.0
      %125 = vmatprep.subr.mxu0 0.0
      %126 = vmatpush1.msra.mxu0 0.0
      %127 = vmatprep.subr.mxu0 0.0
      %128 = vmatpush1.msra.mxu0 0.0
      %129 = vmatprep.subr.mxu0 0.0
      %130 = vmatpush1.msra.mxu0 0.0
      %131 = vmatprep.subr.mxu0 0.0
      %132 = vmatpush1.msra.mxu0 0.0
      %133 = vmatprep.subr.mxu0 0.0
      %134 = vmatpush1.msra.mxu0 0.0
      %135 = vmatprep.subr.mxu0 0.0
      %136 = vmatpush1.msra.mxu0 0.0
      %137 = vmatprep.subr.mxu0 0.0
      %138 = vmatpush1.msra.mxu0 0.0
      %139 = vmatprep.subr.mxu0 0.0
      %140 = vmatpush1.msra.mxu0 0.0
      %141 = vmatprep.subr.mxu0 0.0
      %142 = vmatpush1.msra.mxu0 0.0
      %143 = vmatprep.subr.mxu0 0.0
      %144 = vmatpush1.msra.mxu0 0.0
      %145 = vmatprep.subr.mxu0 0.0
      %146 = vmatpush1.msra.mxu0 0.0
      %147 = vmatprep.subr.mxu0 0.0
      %148 = vmatpush1.msra.mxu0 0.0
      %149 = vmatprep.subr.mxu0 0.0
      %150 = vmatpush1.msra.mxu0 0.0
      %151 = vmatprep.subr.mxu0 0.0
      %152 = vmatpush1.msra.mxu0 0.0
      %153 = vmatprep.subr.mxu0 0.0
      %154 = vmatpush1.msra.mxu0 0.0
      %155 = vmatprep.mubr.f32.mxu0 0.0
      %156 = vmatmul.mubr.f32.gmra.mrb[0].mxu0 %v89
      %v157 = vpop.f32.mrb[0].mxu0
      %v158 = vadd.f32 %v86, %v157
      %v159 = vpop.f32.mrb[0].mxu0
      %160 = vdwg.mxu0
      %vm161 = vcmask 9216
      %v162 = vsel %vm161, %v158, -inf
      %163 = vmax.xlane.f32.xlu0 %v162
      %v164 = vpop.xlane.xlu0 %163
      %v165 = vsub.f32 %v158, %v164
      %v166 = vmul.f32 %v165, 1.442695
      %v167 = vpow.pop %v166
      %v168 = vsel %vm161, %v167, 0.0
      %169 = vadd.xlane.f32.xlu0 %v168
      %v170 = vpop.xlane.xlu0 %169
      %v171 = vrcp.pop %v170
      %v172 = vmul.f32 %v167, %v171
      %173 = vst.msk [vmem:[#allocation6] sm:$0x3] %vm161, %v172
      %v174 = vld [vmem:[%s4] sm:$0x3]
      %v175 = vsel %vm161, %v174, -inf
      %176 = vmax.xlane.f32.xlu0 %v175
      %v177 = vpop.xlane.xlu0 %176
      %v178 = vsub.f32 %v174, %v177
      %v179 = vmul.f32 %v178, 1.442695
      %v180 = vpow.pop %v179
      %v181 = vsel %vm161, %v180, 0.0
      %182 = vadd.xlane.f32.xlu0 %v181
      %v183 = vpop.xlane.xlu0 %182
      %v184 = vrcp.pop %v183
      %v185 = vmul.f32 %v180, %v184
      %s186 = sld [smem:[#allocation3]]
      %s187 = sld [smem:[#allocation3 + $0x1]]
      %s188 = smul.f32 %s186, %s187
      %v189 = vld [vmem:[%s5] sm:$0x3]
      %v190 = vstv %s188
      %v191 = vmul.f32 %v190, %v185
      %s192 = ssub.f32 1.0, %s188
      %v193 = vstv %s192
      %v194 = vmul.f32 %v193, %v189
      %v195 = vadd.f32 %v191, %v194
      %v196 = vlog2.pop %v172
      %v197 = vmul.f32 %v196, 0.6931472
      %v198 = vmax.f32 %v197, -100.0
      %v199 = vsub.f32 1.0, %v172
      %v200 = vlog2.pop %v199
      %v201 = vmul.f32 %v200, 0.6931472
      %v202 = vmax.f32 %v201, -100.0
      %v203 = vmul.f32 %v195, %v198
      %v204 = vsub.f32 1.0, %v195
      %v205 = vmul.f32 %v204, %v202
      %v206 = vadd.f32 %v203, %v205
      %v207 = vsub.f32 0.0, %v206
      %v208 = vsel %vm161, %v207, 0.0
      %209 = vadd.xlane.f32.xlu0 %v208
      %v210 = vpop.xlane.xlu0 %209
      %vm211 = vcmask 1024
      %212 = vst.msk [vmem:[%s7] sm:$0x3] %vm211, %v210
      %v213 = vmul.f32 %v185, 1.442695
      %v214 = vpow.pop %v213
      %v215 = vsub.f32 %v185, %v172
      %v216 = vmul.f32 %v214, %v215
      %v217 = vsel %vm161, %v216, 0.0
      %218 = vadd.xlane.f32.xlu0 %v217
      %v219 = vpop.xlane.xlu0 %218
      %220 = vst.msk [vmem:[%s8] sm:$0x3] %vm211, %v219
    $region37: #{toxcl_head.1} parent=1 // pred_fallthru
      _
    // Predicated region
    $region38: #{toxcl_head.1} parent=1 // pred_check
      _
    $region39: #{toxcl_head.1} parent=1 // pred_check_branch
      %222 = sbr.rel (0) target = $region41
    $region40: #{toxcl_head.1} parent=1 // pred_region
      %s224 = ssub.s32 32, 32
      %225 = vsyncadd [#allocation4], %s224
      %s227 = sshll.u32 [#allocation6], 4
      %s228 = int_to_ptr.vmem [resolvable:$true] %s227
      %230 = dma.vmem_to_hbm [thread:$0]  %s228, 32, %s6, [#allocation4]
    $region41: #{toxcl_head.1} parent=1 // pred_fallthru
      _
    // Predicated region
    $region42: #{toxcl_head.1} parent=1 // pred_check
      _
    $region43: #{toxcl_head.1} parent=1 // pred_check_branch
      %232 = sbr.rel (0) target = $region45
    $region44: #{toxcl_head.1} parent=1 // pred_region
      _
    $region45: #{toxcl_head.1} parent=1 // pred_fallthru
      _
    // Predicated region
    $region46: #{toxcl_head.1} parent=1 // pred_check
      _
    $region47: #{toxcl_head.1} parent=1 // pred_check_branch
      %234 = sbr.rel (0) target = $region49
    $region48: #{toxcl_head.1} parent=1 // pred_region
      _
    $region49: #{toxcl_head.1} parent=1 // pred_fallthru
      _
    // Predicated region
    $region50: #{toxcl_head.1} parent=1 // pred_check
      _
    $region51: #{toxcl_head.1} parent=1 // pred_check_branch
      %236 = sbr.rel (0) target = $region53
    $region52: #{toxcl_head.1} parent=1 // pred_region
      %237 = dma.done [#allocation4], 32
    $region53: #{toxcl_head.1} parent=1 // pred_fallthru
      _
    // Predicated region
    $region54: #{toxcl_head.1} parent=1 // pred_check
      _
    $region55: #{toxcl_head.1} parent=1 // pred_check_branch
      %239 = sbr.rel (0) target = $region57
    $region56: #{toxcl_head.1} parent=1 // pred_region
      _
    $region57: #{toxcl_head.1} parent=1 // pred_fallthru
      _
    // Predicated region
    $region58: #{toxcl_head.1} parent=1 // pred_check
      _
    $region59: #{toxcl_head.1} parent=1 // pred_check_branch
      %241 = sbr.rel (0) target = $region61
    $region60: #{toxcl_head.1} parent=1 // pred_region
      _
    $region61: #{toxcl_head.1} parent=1 // pred_fallthru
      _
    %242 = vsyncpa [#allocation4], 1
    %243 = vsyncpa [#allocation5], 1

</llo_original>
